<compile_context>
chip_gen: v7x
topology: tpu7x:2x2x1
jax: 0.10.0
libtpu: 0.0.40
codegen_flags: <defaults>
</compile_context>

<pallas_src>
import functools

import jax
import jax.numpy as jnp
from jax import lax
from jax.experimental import pallas as pl
from jax.experimental.pallas import tpu as pltpu


def _netvlad_kernel(x_ref, w_ref, c_ref, b_ref, o_ref, *, bt, n):
    # x_ref: (Bt*N, D) f32     w_ref: (Kp, D) f32  (= 2*alpha*centroids, padded)
    # c_ref: (Kp, D)  f32      b_ref: (1, Kp) f32  (bias, -1e30 on padded rows)
    # o_ref: (Bt, Kp, D) f32
    x = x_ref[...]                       # (Bt*N, D)
    w = w_ref[...]                       # (Kp, D)
    c = c_ref[...]                       # (Kp, D)
    bias = b_ref[...]                    # (1, Kp)

    # 1) L2-normalize descriptors over channels (F.normalize, eps=1e-12),
    #    as rsqrt-and-multiply: x / max(||x||, eps) == x * rsqrt(max(ssq, eps^2))
    ssq = jnp.sum(x * x, axis=-1, keepdims=True)                 # (Bt*N, 1)
    xn = x * lax.rsqrt(jnp.maximum(ssq, 1e-24))                  # (Bt*N, D)

    # 2) soft-assignment logits (2*alpha folded into w in the wrapper)
    logits = lax.dot_general(xn, w, (((1,), (1,)), ((), ())),
                             preferred_element_type=jnp.float32) + bias  # (Bt*N, Kp)

    # 3) unnormalized softmax; padded clusters (bias -1e30) underflow to 0.
    #    Skip the full-tile divide: fold 1/Z into the descriptors instead.
    m = jnp.max(logits, axis=-1, keepdims=True)
    e = jnp.exp(logits - m)                                      # (Bt*N, Kp)
    zinv = 1.0 / jnp.sum(e, axis=-1, keepdims=True)              # (Bt*N, 1)
    xs = xn * zinv                                               # (Bt*N, D)

    kp = e.shape[-1]
    e_b = e.reshape(bt, n, kp)                                   # (Bt, N, Kp)
    xs_b = xs.reshape(bt, n, xs.shape[-1])                       # (Bt, N, D)
    zc = jnp.broadcast_to(zinv.reshape(bt, n, 1), (bt, n, 8))    # (Bt, N, 8)

    # 4) factorized VLAD, batched over Bt:
    #    v[b,k,d] = sum_n a[b,n,k]*xn[b,n,d] - c[k,d]*sum_n a[b,n,k]
    v = jnp.einsum('bnk,bnd->bkd', e_b, xs_b,
                   preferred_element_type=jnp.float32)           # (Bt, Kp, D)
    asum = jnp.einsum('bnk,bnc->bkc', e_b, zc,
                      preferred_element_type=jnp.float32)        # (Bt, Kp, 8)
    v = v - c[None, :, :] * asum[:, :, 0:1]                      # (Bt, Kp, D)

    # 5) intra-normalize per cluster row, then global L2 over (Kp, D).
    #    Global scale derived from the per-row sums -> no second full-tile
    #    square/reduce; one fused scale applied to v.
    vs = jnp.sum(v * v, axis=-1, keepdims=True)                  # (Bt, Kp, 1)
    inv_row = lax.rsqrt(jnp.maximum(vs, 1e-24))                  # (Bt, Kp, 1)
    tot = jnp.sum(vs * inv_row * inv_row, axis=1, keepdims=True)  # (Bt, 1, 1)
    scale = inv_row * lax.rsqrt(jnp.maximum(tot, 1e-24))         # (Bt, Kp, 1)
    o_ref[...] = v * scale                                        # one lane-dense store


def _choose_block_batch(B, N, block_batch):
    """Pick Bt (batch elements per grid step).

    Prefers: Bt divides B (no zero-pad copy of x), Bt*N sublane aligned
    ((8,128) block constraint), and G >= 2 so the 'parallel' batch axis can
    split across TensorCores.  Falls back to a padded multiple-of-8 Bt only
    when N is not sublane friendly.
    """
    limit = max(1, min(int(block_batch), B if B == 1 else (B + 1) // 2))
    for bt in range(limit, 0, -1):
        if B % bt == 0 and ((bt * N) % 8 == 0 or bt == B):
            return bt, B // bt, B
    # TODO(synk): rare fallback (N % 8 != 0 and no aligned divisor of B) pays a
    # zero-pad copy of x; a ragged last block via pl.BoundedSlice would avoid it.
    bt = 8
    g = pl.cdiv(B, bt)
    return bt, g, g * bt


def netvlad_forward(x_nchw, centroids, alpha=100.0, block_batch=4):
    """x_nchw: (B, D, H, W) float32.  centroids: (K, D) float32.

    block_batch: batch elements per grid step.  Default 4 keeps the per-step
    VMEM footprint inside v7x's 64 MiB for realistic NetVLAD shapes; raise it
    (together with vmem_limit_bytes) on v5e/v6e (128 MiB VMEM) to amortize
    per-step overhead.
    """
    B, D, H, W = x_nchw.shape
    K = centroids.shape[0]
    N = H * W

    # Lane-pad clusters to a multiple of 128: full-lane softmax, native MXU
    # tiles, unmasked lane-dense stores.  Padded clusters get zero centroids
    # and a -1e30 bias -> exactly zero weight / zero VLAD rows, sliced away.
    Kp = pl.cdiv(K, 128) * 128

    # NCHW -> (B*N, D).  allow_input_fusion below lets XLA fold this transpose
    # into the pallas_call input DMA instead of a separate HBM round trip.
    x = jnp.transpose(x_nchw.reshape(B, D, N), (0, 2, 1)).astype(jnp.float32)

    c = centroids.astype(jnp.float32)
    bias_real = -alpha * jnp.sqrt(jnp.sum(c * c, axis=1))             # (K,)
    c_pad = jnp.zeros((Kp, D), jnp.float32).at[:K].set(c)
    w_pad = (2.0 * float(alpha)) * c_pad                              # fold 2*alpha into the constant operand
    bias_pad = jnp.full((1, Kp), -1e30, jnp.float32).at[0, :K].set(bias_real)

    Bt, G, Bpad = _choose_block_batch(B, N, block_batch)
    if Bpad != B:                         # fallback path only (see _choose_block_batch)
        x = jnp.concatenate([x, jnp.zeros((Bpad - B, N, D), jnp.float32)], axis=0)
    x2 = x.reshape(Bpad * N, D)

    kernel = functools.partial(_netvlad_kernel, bt=Bt, n=N)

    vlad = pl.pallas_call(
        kernel,
        out_shape=jax.ShapeDtypeStruct((Bpad, Kp, D), jnp.float32),
        grid_spec=pltpu.PrefetchScalarGridSpec(
            num_scalar_prefetch=0,
            grid=(G,),
            in_specs=[
                pl.BlockSpec((Bt * N, D), lambda g: (g, 0)),   # activations
                pl.BlockSpec((Kp, D), lambda g: (0, 0)),       # 2*alpha*centroids
                pl.BlockSpec((Kp, D), lambda g: (0, 0)),       # centroids
                pl.BlockSpec((1, Kp), lambda g: (0, 0)),       # bias
            ],
            out_specs=pl.BlockSpec((Bt, Kp, D), lambda g: (g, 0, 0)),
        ),
        compiler_params=pltpu.CompilerParams(
            dimension_semantics=("parallel",),
            vmem_limit_bytes=64 * 1024 * 1024,
            allow_input_fusion=[True, False, False, False],
        ),
    )(x2, w_pad, c_pad, bias_pad)

    # Drop padded batches / clusters; flatten (K, D) row-major like vlad.view(B, -1).
    return vlad[:B, :K, :].reshape(B, K * D)


def _netvlad_reference(x_nchw, centroids, alpha=100.0):
    """Pure-JAX reference mirroring the PyTorch forward."""
    B, D, H, W = x_nchw.shape
    K = centroids.shape[0]
    N = H * W
    x = x_nchw.astype(jnp.float32)
    nrm = jnp.sqrt(jnp.sum(x * x, axis=1, keepdims=True))
    xn = x / jnp.maximum(nrm, 1e-12)                                  # (B, D, H, W)
    w = 2.0 * alpha * centroids                                       # (K, D)
    b = -alpha * jnp.sqrt(jnp.sum(centroids * centroids, axis=1))     # (K,)
    sa = jnp.einsum('bdhw,kd->bkhw', xn, w,
                    precision=lax.Precision.HIGHEST) + b[None, :, None, None]
    sa = sa.reshape(B, K, N)
    sa = jax.nn.softmax(sa, axis=1)
    xf = xn.reshape(B, D, N)
    resid = xf[:, None, :, :] - centroids[None, :, :, None]           # (B, K, D, N)
    vlad = jnp.sum(resid * sa[:, :, None, :], axis=-1)                # (B, K, D)
    vlad = vlad / jnp.maximum(
        jnp.sqrt(jnp.sum(vlad * vlad, axis=2, keepdims=True)), 1e-12)
    vlad = vlad.reshape(B, -1)
    vlad = vlad / jnp.maximum(
        jnp.sqrt(jnp.sum(vlad * vlad, axis=1, keepdims=True)), 1e-12)
    return vlad


if __name__ == "__main__":
    # Small shapes consistent with the module defaults:
    # num_clusters=6, desc_dim=128, alpha=100.0, normalize_input=True
    B, D, H, W, K = 2, 128, 4, 4, 6
    alpha = 100.0

    key = jax.random.PRNGKey(0)
    kx, kc = jax.random.split(key)
    x = jax.random.normal(kx, (B, D, H, W), dtype=jnp.float32)
    # torch.rand -> uniform [0, 1)
    centroids = jax.random.uniform(kc, (K, D), dtype=jnp.float32)

    out = netvlad_forward(x, centroids, alpha)
    out = jax.block_until_ready(out)

    ref = _netvlad_reference(x, centroids, alpha)
    assert out.shape == (B, K * D)
    assert jnp.allclose(out, ref, rtol=1e-4, atol=1e-5), "mismatch vs reference"

    print("KERNEL_OK")
</pallas_src>

<mosaic_0001>
module attributes {stable_mosaic.version = 11 : i64} {
  func.func @_netvlad_kernel(%arg0: i32, %arg1: memref<16x128xf32, #tpu.memory_space<vmem>>, %arg2: memref<128x128xf32, #tpu.memory_space<vmem>>, %arg3: memref<128x128xf32, #tpu.memory_space<vmem>>, %arg4: memref<1x128xf32, #tpu.memory_space<vmem>>, %arg5: memref<1x128x128xf32, #tpu.memory_space<vmem>>) attributes {dimension_semantics = [#tpu.dimension_semantics<parallel>], iteration_bounds = array<i64: 2>, scalar_prefetch = 0 : i64, scratch_operands = 0 : i64, tpu.core_type = #tpu.core_type<tc>, window_params = [{transform_indices = @transform_0, window_bounds = array<i64: 16, 128>}, {pipeline_mode = #tpu.pipeline_mode<synchronous>, transform_indices = @transform_1, window_bounds = array<i64: 128, 128>}, {pipeline_mode = #tpu.pipeline_mode<synchronous>, transform_indices = @transform_2, window_bounds = array<i64: 128, 128>}, {pipeline_mode = #tpu.pipeline_mode<synchronous>, transform_indices = @transform_3, window_bounds = array<i64: 1, 128>}, {transform_indices = @transform_4, window_bounds = array<i64: 1, 128, 128>}]} {
    %c0 = arith.constant 0 : index
    %c0_0 = arith.constant 0 : index
    %0 = vector.load %arg1[%c0, %c0_0] : memref<16x128xf32, #tpu.memory_space<vmem>>, vector<16x128xf32>
    %c0_1 = arith.constant 0 : index
    %c0_2 = arith.constant 0 : index
    %1 = vector.load %arg2[%c0_1, %c0_2] : memref<128x128xf32, #tpu.memory_space<vmem>>, vector<128x128xf32>
    %c0_3 = arith.constant 0 : index
    %c0_4 = arith.constant 0 : index
    %2 = vector.load %arg3[%c0_3, %c0_4] : memref<128x128xf32, #tpu.memory_space<vmem>>, vector<128x128xf32>
    %c0_5 = arith.constant 0 : index
    %c0_6 = arith.constant 0 : index
    %3 = vector.load %arg4[%c0_5, %c0_6] : memref<1x128xf32, #tpu.memory_space<vmem>>, vector<1x128xf32>
    %4 = arith.mulf %0, %0 : vector<16x128xf32>
    %cst = arith.constant dense<0.000000e+00> : vector<16xf32>
    %5 = vector.multi_reduction <add>, %4, %cst [1] : vector<16x128xf32> to vector<16xf32>
    %6 = vector.shape_cast %5 : vector<16xf32> to vector<16x1xf32>
    %cst_7 = arith.constant 1.000000e-24 : f32
    %7 = vector.broadcast %cst_7 : f32 to vector<16x1xf32>
    %8 = arith.maximumf %6, %7 : vector<16x1xf32>
    %9 = math.rsqrt %8 : vector<16x1xf32>
    %10 = vector.broadcast %9 : vector<16x1xf32> to vector<16x128xf32>
    %11 = arith.mulf %0, %10 : vector<16x128xf32>
    %cst_8 = arith.constant dense<0.000000e+00> : vector<16x128xf32>
    %12 = tpu.matmul %11, %1, %cst_8 {dimension_numbers = #tpu.dot_dimension_numbers<[1], [1], [0], [0], [0, 0, 1, 0], [], []>} : vector<16x128xf32>, vector<128x128xf32>, vector<16x128xf32> -> vector<16x128xf32>
    %13 = vector.broadcast %3 : vector<1x128xf32> to vector<16x128xf32>
    %14 = arith.addf %12, %13 : vector<16x128xf32>
    %cst_9 = arith.constant dense<0xFF800000> : vector<16xf32>
    %15 = vector.multi_reduction <maximumf>, %14, %cst_9 [1] : vector<16x128xf32> to vector<16xf32>
    %16 = vector.shape_cast %15 : vector<16xf32> to vector<16x1xf32>
    %17 = vector.broadcast %16 : vector<16x1xf32> to vector<16x128xf32>
    %18 = arith.subf %14, %17 : vector<16x128xf32>
    %19 = math.exp %18 : vector<16x128xf32>
    %cst_10 = arith.constant dense<0.000000e+00> : vector<16xf32>
    %20 = vector.multi_reduction <add>, %19, %cst_10 [1] : vector<16x128xf32> to vector<16xf32>
    %21 = vector.shape_cast %20 : vector<16xf32> to vector<16x1xf32>
    %cst_11 = arith.constant 1.000000e+00 : f32
    %22 = vector.broadcast %cst_11 : f32 to vector<16x1xf32>
    %23 = arith.divf %22, %21 : vector<16x1xf32>
    %24 = vector.broadcast %23 : vector<16x1xf32> to vector<16x128xf32>
    %25 = arith.mulf %11, %24 : vector<16x128xf32>
    %26 = vector.shape_cast %19 : vector<16x128xf32> to vector<1x16x128xf32>
    %27 = vector.shape_cast %25 : vector<16x128xf32> to vector<1x16x128xf32>
    %28 = vector.shape_cast %23 : vector<16x1xf32> to vector<1x16x1xf32>
    %29 = vector.shape_cast %28 : vector<1x16x1xf32> to vector<1x16x1xf32>
    %30 = vector.broadcast %29 : vector<1x16x1xf32> to vector<1x16x8xf32>
    "tpu.trace_start"() <{level = 10 : i32, message = "bnk,bnd->bkd"}> : () -> ()
    %cst_12 = arith.constant dense<0.000000e+00> : vector<1x128x128xf32>
    %31 = tpu.matmul %26, %27, %cst_12 {dimension_numbers = #tpu.dot_dimension_numbers<[1], [1], [2], [2], [0, 0, 0, 2, 1, 2], [0], [0]>} : vector<1x16x128xf32>, vector<1x16x128xf32>, vector<1x128x128xf32> -> vector<1x128x128xf32>
    "tpu.trace_stop"() : () -> ()
    "tpu.trace_start"() <{level = 10 : i32, message = "bnk,bnc->bkc"}> : () -> ()
    %cst_13 = arith.constant dense<0.000000e+00> : vector<1x128x8xf32>
    %32 = tpu.matmul %26, %30, %cst_13 {dimension_numbers = #tpu.dot_dimension_numbers<[1], [1], [2], [2], [0, 0, 0, 2, 1, 2], [0], [0]>} : vector<1x16x128xf32>, vector<1x16x8xf32>, vector<1x128x8xf32> -> vector<1x128x8xf32>
    "tpu.trace_stop"() : () -> ()
    %33 = vector.shape_cast %2 : vector<128x128xf32> to vector<1x128x128xf32>
    %34 = vector.extract_strided_slice %32 {offsets = [0, 0, 0], sizes = [1, 128, 1], strides = [1, 1, 1]} : vector<1x128x8xf32> to vector<1x128x1xf32>
    %35 = vector.broadcast %34 : vector<1x128x1xf32> to vector<1x128x128xf32>
    %36 = arith.mulf %33, %35 : vector<1x128x128xf32>
    %37 = arith.subf %31, %36 : vector<1x128x128xf32>
    %38 = arith.mulf %37, %37 : vector<1x128x128xf32>
    %cst_14 = arith.constant dense<0.000000e+00> : vector<1x128xf32>
    %39 = vector.multi_reduction <add>, %38, %cst_14 [2] : vector<1x128x128xf32> to vector<1x128xf32>
    %40 = vector.shape_cast %39 : vector<1x128xf32> to vector<1x128x1xf32>
    %cst_15 = arith.constant 1.000000e-24 : f32
    %41 = vector.broadcast %cst_15 : f32 to vector<1x128x1xf32>
    %42 = arith.maximumf %40, %41 : vector<1x128x1xf32>
    %43 = math.rsqrt %42 : vector<1x128x1xf32>
    %44 = arith.mulf %40, %43 : vector<1x128x1xf32>
    %45 = arith.mulf %44, %43 : vector<1x128x1xf32>
    %cst_16 = arith.constant dense<0.000000e+00> : vector<1x1xf32>
    %46 = vector.multi_reduction <add>, %45, %cst_16 [1] : vector<1x128x1xf32> to vector<1x1xf32>
    %47 = vector.shape_cast %46 : vector<1x1xf32> to vector<1x1x1xf32>
    %cst_17 = arith.constant 1.000000e-24 : f32
    %48 = vector.broadcast %cst_17 : f32 to vector<1x1x1xf32>
    %49 = arith.maximumf %47, %48 : vector<1x1x1xf32>
    %50 = math.rsqrt %49 : vector<1x1x1xf32>
    %51 = vector.broadcast %50 : vector<1x1x1xf32> to vector<1x128x1xf32>
    %52 = arith.mulf %43, %51 : vector<1x128x1xf32>
    %53 = vector.broadcast %52 : vector<1x128x1xf32> to vector<1x128x128xf32>
    %54 = arith.mulf %37, %53 : vector<1x128x128xf32>
    %c0_18 = arith.constant 0 : index
    %c0_19 = arith.constant 0 : index
    %c0_20 = arith.constant 0 : index
    %55 = vector.load %arg5[%c0_18, %c0_19, %c0_20] : memref<1x128x128xf32, #tpu.memory_space<vmem>>, vector<1x128x128xf32>
    tpu.vector_store %arg5[%c0_18, %c0_19, %c0_20], %54 {strides = array<i32>} : memref<1x128x128xf32, #tpu.memory_space<vmem>>, vector<1x128x128xf32>,
    return
  }
  func.func @transform_0(%arg0: i32) -> (i32, i32) {
    %c0_i32 = arith.constant 0 : i32
    %c0_i32_0 = arith.constant 0 : i32
    return %arg0, %c0_i32 : i32, i32
  }
  func.func @transform_1(%arg0: i32) -> (i32, i32) {
    %c0_i32 = arith.constant 0 : i32
    %c0_i32_0 = arith.constant 0 : i32
    %c0_i32_1 = arith.constant 0 : i32
    return %c0_i32, %c0_i32_0 : i32, i32
  }
  func.func @transform_2(%arg0: i32) -> (i32, i32) {
    %c0_i32 = arith.constant 0 : i32
    %c0_i32_0 = arith.constant 0 : i32
    %c0_i32_1 = arith.constant 0 : i32
    return %c0_i32, %c0_i32_0 : i32, i32
  }
  func.func @transform_3(%arg0: i32) -> (i32, i32) {
    %c0_i32 = arith.constant 0 : i32
    %c0_i32_0 = arith.constant 0 : i32
    %c0_i32_1 = arith.constant 0 : i32
    return %c0_i32, %c0_i32_0 : i32, i32
  }
  func.func @transform_4(%arg0: i32) -> (i32, i32, i32) {
    %c0_i32 = arith.constant 0 : i32
    %c0_i32_0 = arith.constant 0 : i32
    %c0_i32_1 = arith.constant 0 : i32
    return %arg0, %c0_i32, %c0_i32_0 : i32, i32, i32
  }
}

</mosaic_0001>

<llo_original>
// kernel: tpu_custom_call.1
$region0: #{tpu_custom_call.1}
  #allocation0 [shape = 'u32[]', space=smem, size = 0x4, offset = 0x4, fixed_abs, tag = 'smem constant byte address 0x4 - core index']
  #allocation1 [shape = 'u32[144,128]{1,0:T(1,128)}', space=vmem, size = 0x12000, scoped, tag = 'internal scratch']
  %s0 = inlined_call_operand.hbm [shape: f32[32,128], index: 0, kind: input, shape index: {}]
  %s1 = inlined_call_operand.hbm [shape: f32[128,128], index: 1, kind: input, shape index: {}]
  %s2 = inlined_call_operand.hbm [shape: f32[128,128], index: 2, kind: input, shape index: {}]
  %s3 = inlined_call_operand.hbm [shape: f32[1,128], index: 3, kind: input, shape index: {}]
  %s4 = inlined_call_operand.hbm [shape: f32[2,128,128], index: 4, kind: output, shape index: {}]
  %s5 = sld [smem:[#allocation0]]
  $region65: #{tpu_custom_call.1} parent=0
    _
  %s7 = ssub.s32 1, %s5
  %s8 = scalar_select 0, %s7, %s5
  $region1: #{tpu_custom_call.1} parent=0
    #allocation2 [shape = 'u8[16384]{0}', space=vmem, size = 0x4000, scoped, tag = 'input window, operand 0']
    #allocation3 [shape = 's32[2]{0}', space=sflag, size = 0x8, scoped, tag = 'scoped memory for tpu_custom_call.1']
    #allocation4 [shape = 's32[2]{0}', space=sflag, size = 0x8, scoped, tag = 'scoped memory for tpu_custom_call.1']
    #allocation5 [shape = 'u8[65536]{0}', space=vmem, size = 0x10000, scoped, tag = 'input window, operand 1, single buffered']
    #allocation6 [shape = 's32[1]{0}', space=sflag, size = 0x4, scoped, tag = 'scoped memory for tpu_custom_call.1']
    #allocation7 [shape = 'u8[65536]{0}', space=vmem, size = 0x10000, scoped, tag = 'input window, operand 2, single buffered']
    #allocation8 [shape = 'u8[512]{0}', space=vmem, size = 0x400, scoped, tag = 'input window, operand 3, single buffered']
    #allocation9 [shape = 's32[1]{0}', space=sflag, size = 0x4, scoped, tag = 'scoped memory for tpu_custom_call.1']
    #allocation10 [shape = 'u8[131072]{0}', space=vmem, size = 0x20000, scoped, tag = 'output window, operand 0']
    %9 = vsyncpa [#allocation3], 0
    %s10 = scalar_lea.sflag [#allocation3], 1
    %11 = vsyncpa %s10, 0
    %12 = vsyncpa [#allocation6], 0
    %13 = vsyncpa [#allocation9], 0
    %14 = vsyncpa [#allocation4], 0
    %s15 = scalar_lea.sflag [#allocation4], 1
    %16 = vsyncpa %s15, 0
    loop: start=0, step=1, limit=4
    $region2: #{tpu_custom_call.1} parent=1 // loop_pre_header
      _
    $region3: #{tpu_custom_call.1} parent=1 // loop_header
      %s18 = sphi 0, %s22
      %p19 = scmp.ge.s32.totalorder %s18, 4
      %s28 = sphi 0, %s30
      %s31 = sphi 0, %s28
      %s32 = sphi 0, %s31
      %s48 = sphi 0, %s32
      %s52 = sphi 0, %s52
      %s54 = sphi 0, %s52
      %s55 = sphi 0, %s54
      %s69 = sphi 0, %s55
      %s73 = sphi 0, %s73
      %s75 = sphi 0, %s73
      %s76 = sphi 0, %s75
      %s90 = sphi 0, %s76
      %s94 = sphi 0, %s94
      %s96 = sphi 0, %s94
      %s97 = sphi 0, %s96
      %s111 = sphi 0, %s97
      %s117 = sphi 0, %s119
      %s120 = sphi 0, %s117
      %s121 = sphi 0, %s120
      %s137 = sphi 0, %s121
    $region4: #{tpu_custom_call.1} parent=1 // loop_header_branch
      %21 = sbr.rel (%p19) target = $region8
    $region5: #{tpu_custom_call.1} parent=1 // loop_body
      %s23 = ssub.s32 %s18, 1
      %s24 = ssub.s32 %s18, 2
      %s25 = sadd.s32 %s18, 1
      %s26 = ssub.s32 %s18, %s25
      %p27 = scmp.eq.s32.totalorder %s26, 0
      %s29 = sadd.s32 %s28, 1
      %s30 = scalar_select %p27, %s28, %s29
      %p33 = pneg %p27
      %p34 = scmp.eq.s32.totalorder %s18, 1
      %p35 = por %p33, %p34
      %p36 = scmp.ne.s32.totalorder %s28, %s31
      %p37 = scmp.eq.s32.totalorder %s18, 0
      %p38 = por %p36, %p37
      %p39 = scmp.ne.s32.totalorder %s28, %s31
      %p40 = scmp.eq.s32.totalorder %s23, 1
      %p41 = por %p39, %p40
      %p42 = scmp.ne.s32.totalorder %s31, %s32
      %p43 = scmp.eq.s32.totalorder %s23, 0
      %p44 = por %p42, %p43
      %p45 = scmp.ne.s32.totalorder %s31, %s32
      %p46 = scmp.eq.s32.totalorder %s24, 1
      %p47 = por %p45, %p46
      %p49 = scmp.ne.s32.totalorder %s32, %s48
      %p50 = scmp.eq.s32.totalorder %s24, 0
      %p51 = por %p49, %p50
      %s53 = sadd.s32 %s52, 1
      %p56 = scmp.eq.s32.totalorder %s18, 1
      %p57 = scmp.ne.s32.totalorder %s52, %s54
      %p58 = scmp.eq.s32.totalorder %s18, 0
      %p59 = por %p57, %p58
      %p60 = scmp.ne.s32.totalorder %s52, %s54
      %p61 = scmp.eq.s32.totalorder %s23, 1
      %p62 = por %p60, %p61
      %p63 = scmp.ne.s32.totalorder %s54, %s55
      %p64 = scmp.eq.s32.totalorder %s23, 0
      %p65 = por %p63, %p64
      %p66 = scmp.ne.s32.totalorder %s54, %s55
      %p67 = scmp.eq.s32.totalorder %s24, 1
      %p68 = por %p66, %p67
      %p70 = scmp.ne.s32.totalorder %s55, %s69
      %p71 = scmp.eq.s32.totalorder %s24, 0
      %p72 = por %p70, %p71
      %s74 = sadd.s32 %s73, 1
      %p77 = scmp.eq.s32.totalorder %s18, 1
      %p78 = scmp.ne.s32.totalorder %s73, %s75
      %p79 = scmp.eq.s32.totalorder %s18, 0
      %p80 = por %p78, %p79
      %p81 = scmp.ne.s32.totalorder %s73, %s75
      %p82 = scmp.eq.s32.totalorder %s23, 1
      %p83 = por %p81, %p82
      %p84 = scmp.ne.s32.totalorder %s75, %s76
      %p85 = scmp.eq.s32.totalorder %s23, 0
      %p86 = por %p84, %p85
      %p87 = scmp.ne.s32.totalorder %s75, %s76
      %p88 = scmp.eq.s32.totalorder %s24, 1
      %p89 = por %p87, %p88
      %p91 = scmp.ne.s32.totalorder %s76, %s90
      %p92 = scmp.eq.s32.totalorder %s24, 0
      %p93 = por %p91, %p92
      %s95 = sadd.s32 %s94, 1
      %p98 = scmp.eq.s32.totalorder %s18, 1
      %p99 = scmp.ne.s32.totalorder %s94, %s96
      %p100 = scmp.eq.s32.totalorder %s18, 0
      %p101 = por %p99, %p100
      %p102 = scmp.ne.s32.totalorder %s94, %s96
      %p103 = scmp.eq.s32.totalorder %s23, 1
      %p104 = por %p102, %p103
      %p105 = scmp.ne.s32.totalorder %s96, %s97
      %p106 = scmp.eq.s32.totalorder %s23, 0
      %p107 = por %p105, %p106
      %p108 = scmp.ne.s32.totalorder %s96, %s97
      %p109 = scmp.eq.s32.totalorder %s24, 1
      %p110 = por %p108, %p109
      %p112 = scmp.ne.s32.totalorder %s97, %s111
      %p113 = scmp.eq.s32.totalorder %s24, 0
      %p114 = por %p112, %p113
      %s115 = ssub.s32 %s18, %s25
      %p116 = scmp.eq.s32.totalorder %s115, 0
      %s118 = sadd.s32 %s117, 1
      %s119 = scalar_select %p116, %s117, %s118
      %p122 = pneg %p116
      %p123 = scmp.eq.s32.totalorder %s18, 1
      %p124 = por %p122, %p123
      %p125 = scmp.ne.s32.totalorder %s117, %s120
      %p126 = scmp.eq.s32.totalorder %s18, 0
      %p127 = por %p125, %p126
      %p128 = scmp.ne.s32.totalorder %s117, %s120
      %p129 = scmp.eq.s32.totalorder %s23, 1
      %p130 = por %p128, %p129
      %p131 = scmp.ne.s32.totalorder %s120, %s121
      %p132 = scmp.eq.s32.totalorder %s23, 0
      %p133 = por %p131, %p132
      %p134 = scmp.ne.s32.totalorder %s120, %s121
      %p135 = scmp.eq.s32.totalorder %s24, 1
      %p136 = por %p134, %p135
      %p138 = scmp.ne.s32.totalorder %s121, %s137
      %p139 = scmp.eq.s32.totalorder %s24, 0
      %p140 = por %p138, %p139
      %p141 = scmp.le.s32.totalorder 1, %s18
      %p142 = scmp.lt.s32.totalorder %s18, 3
      %p143 = pnand %p141, %p142
      %p144 = pneg %p143
      // Predicated region
      $region9: #{tpu_custom_call.1} parent=5 // pred_check
        _
      $region10: #{tpu_custom_call.1} parent=5 // pred_check_branch
        %146 = sbr.rel (%p143) target = $region12
      $region11: #{tpu_custom_call.1} parent=5 // pred_region
        %s147 = ssub.s32 %s18, 1
        // Predicated region
        $region13: #{tpu_custom_call.1} parent=11 // pred_check
          %p148 = pneg %p65
        $region14: #{tpu_custom_call.1} parent=11 // pred_check_branch
          %150 = sbr.rel (%p148) target = $region16
        $region15: #{tpu_custom_call.1} parent=11 // pred_region
          %s152 = ssub.s32 2048, 2048
          %153 = vsyncadd [#allocation6], %s152
          %s154 = sshll.u32 [#allocation5], 4
          %s155 = int_to_ptr.vmem [resolvable:$true] %s154
          %160 = dma.hbm_to_vmem [thread:$0]  %s1, 2048, %s155, [#allocation6], 128, 128, 8
        $region16: #{tpu_custom_call.1} parent=11 // pred_fallthru
          _
        // Predicated region
        $region17: #{tpu_custom_call.1} parent=11 // pred_check
          %p161 = pneg %p86
        $region18: #{tpu_custom_call.1} parent=11 // pred_check_branch
          %163 = sbr.rel (%p161) target = $region20
        $region19: #{tpu_custom_call.1} parent=11 // pred_region
          %s165 = ssub.s32 2048, 2048
          %166 = vsyncadd [#allocation6], %s165
          %s167 = sshll.u32 [#allocation7], 4
          %s168 = int_to_ptr.vmem [resolvable:$true] %s167
          %173 = dma.hbm_to_vmem [thread:$0]  %s2, 2048, %s168, [#allocation6], 128, 128, 8
        $region20: #{tpu_custom_call.1} parent=11 // pred_fallthru
          _
        // Predicated region
        $region21: #{tpu_custom_call.1} parent=11 // pred_check
          %p174 = pneg %p107
        $region22: #{tpu_custom_call.1} parent=11 // pred_check_branch
          %176 = sbr.rel (%p174) target = $region24
        $region23: #{tpu_custom_call.1} parent=11 // pred_region
          %s178 = ssub.s32 16, 16
          %179 = vsyncadd [#allocation9], %s178
          %s181 = sshll.u32 [#allocation8], 4
          %s182 = int_to_ptr.vmem [resolvable:$true] %s181
          %184 = dma.hbm_to_vmem [thread:$0]  %s3, 16, %s182, [#allocation9]
        $region24: #{tpu_custom_call.1} parent=11 // pred_fallthru
          _
      $region12: #{tpu_custom_call.1} parent=5 // pred_fallthru
        _
      %p185 = scmp.lt.s32.totalorder %s18, 2
      // Predicated region
      $region25: #{tpu_custom_call.1} parent=5 // pred_check
        %p186 = pneg %p185
      $region26: #{tpu_custom_call.1} parent=5 // pred_check_branch
        %188 = sbr.rel (%p186) target = $region28
      $region27: #{tpu_custom_call.1} parent=5 // pred_region
        // Predicated region
        $region29: #{tpu_custom_call.1} parent=27 // pred_check
          %p189 = pneg %p38
        $region30: #{tpu_custom_call.1} parent=27 // pred_check_branch
          %191 = sbr.rel (%p189) target = $region32
        $region31: #{tpu_custom_call.1} parent=27 // pred_region
          %s192 = sand.u32 %s28, 1
          %s193 = scalar_lea.sflag [#allocation3], %s192
          %s194 = sand.u32 %s28, 1
          %s195 = smul.addr %s194, 16
          %s196 = scalar_lea.vmem [#allocation2], %s195
          %s197 = smul.u32 2, %s18
          %s199 = ssub.s32 256, 256
          %200 = vsyncadd %s193, %s199
          %s201 = smul.addr %s197, 128
          %s202 = scalar_lea.hbm %s0, %s201
          %s203 = sshll.u32 %s196, 4
          %s204 = int_to_ptr.vmem [resolvable:$true] %s203
          %209 = dma.hbm_to_vmem [thread:$0]  %s202, 256, %s204, %s193, 128, 128, 8
        $region32: #{tpu_custom_call.1} parent=27 // pred_fallthru
          _
      $region28: #{tpu_custom_call.1} parent=5 // pred_fallthru
        _
      %p210 = scmp.le.s32.totalorder 1, %s18
      %p211 = scmp.lt.s32.totalorder %s18, 3
      %p212 = pnand %p210, %p211
      %p213 = pneg %p212
      // Predicated region
      $region33: #{tpu_custom_call.1} parent=5 // pred_check
        _
      $region34: #{tpu_custom_call.1} parent=5 // pred_check_branch
        %215 = sbr.rel (%p212) target = $region36
      $region35: #{tpu_custom_call.1} parent=5 // pred_region
        %s216 = ssub.s32 %s18, 1
        %s217 = sand.u32 %s31, 1
        %s218 = scalar_lea.sflag [#allocation3], %s217
        %s219 = sand.u32 %s31, 1
        %s220 = smul.addr %s219, 16
        %s221 = scalar_lea.vmem [#allocation2], %s220
        // Predicated region
        $region37: #{tpu_custom_call.1} parent=35 // pred_check
          %p222 = pneg %p44
        $region38: #{tpu_custom_call.1} parent=35 // pred_check_branch
          %224 = sbr.rel (%p222) target = $region40
        $region39: #{tpu_custom_call.1} parent=35 // pred_region
          %225 = dma.done %s218, 256
        $region40: #{tpu_custom_call.1} parent=35 // pred_fallthru
          _
        // Predicated region
        $region41: #{tpu_custom_call.1} parent=35 // pred_check
          %p226 = pneg %p65
        $region42: #{tpu_custom_call.1} parent=35 // pred_check_branch
          %228 = sbr.rel (%p226) target = $region44
        $region43: #{tpu_custom_call.1} parent=35 // pred_region
          %229 = dma.done [#allocation6], 2048
        $region44: #{tpu_custom_call.1} parent=35 // pred_fallthru
          _
        // Predicated region
        $region45: #{tpu_custom_call.1} parent=35 // pred_check
          %p230 = pneg %p86
        $region46: #{tpu_custom_call.1} parent=35 // pred_check_branch
          %232 = sbr.rel (%p230) target = $region48
        $region47: #{tpu_custom_call.1} parent=35 // pred_region
          %233 = dma.done [#allocation6], 2048
        $region48: #{tpu_custom_call.1} parent=35 // pred_fallthru
          _
        // Predicated region
        $region49: #{tpu_custom_call.1} parent=35 // pred_check
          %p234 = pneg %p107
        $region50: #{tpu_custom_call.1} parent=35 // pred_check_branch
          %236 = sbr.rel (%p234) target = $region52
        $region51: #{tpu_custom_call.1} parent=35 // pred_region
          %237 = dma.done [#allocation9], 16
        $region52: #{tpu_custom_call.1} parent=35 // pred_fallthru
          _
        %s238 = sand.u32 %s31, 1
        %s239 = scalar_lea.sflag [#allocation3], %s238
        %s240 = sand.u32 %s31, 1
        %s241 = smul.addr %s240, 16
        %s242 = scalar_lea.vmem [#allocation2], %s241
        %p243 = pneg %p44
        %p244 = pneg %p41
        %p245 = pneg %p65
        %p246 = pneg %p62
        %p247 = pneg %p86
        %p248 = pneg %p83
        %p249 = pneg %p107
        %p250 = pneg %p104
        %p251 = pneg %p133
        %p252 = pneg %p130
        %s253 = sand.u32 %s120, 1
        %s254 = scalar_lea.sflag [#allocation4], %s253
        %s255 = sand.u32 %s120, 1
        %s256 = smul.addr %s255, 128
        %s257 = scalar_lea.vmem [#allocation10], %s256
        %s258 = smul.u32 2, %s23
        %v259 = vld [vmem:[%s221] sm:$0xff]
        %v260 = vld [vmem:[%s221 + $0x8] sm:$0xff]
        %v261 = vld [vmem:[#allocation5] sm:$0xff]
        %v262 = vld [vmem:[#allocation5 + $0x8] sm:$0xff]
        %v263 = vld [vmem:[#allocation5 + $0x10] sm:$0xff]
        %v264 = vld [vmem:[#allocation5 + $0x18] sm:$0xff]
        %v265 = vld [vmem:[#allocation5 + $0x20] sm:$0xff]
        %v266 = vld [vmem:[#allocation5 + $0x28] sm:$0xff]
        %v267 = vld [vmem:[#allocation5 + $0x30] sm:$0xff]
        %v268 = vld [vmem:[#allocation5 + $0x38] sm:$0xff]
        %v269 = vld [vmem:[#allocation5 + $0x40] sm:$0xff]
        %v270 = vld [vmem:[#allocation5 + $0x48] sm:$0xff]
        %v271 = vld [vmem:[#allocation5 + $0x50] sm:$0xff]
        %v272 = vld [vmem:[#allocation5 + $0x58] sm:$0xff]
        %v273 = vld [vmem:[#allocation5 + $0x60] sm:$0xff]
        %v274 = vld [vmem:[#allocation5 + $0x68] sm:$0xff]
        %v275 = vld [vmem:[#allocation5 + $0x70] sm:$0xff]
        %v276 = vld [vmem:[#allocation5 + $0x78] sm:$0xff]
        %v277 = vld [vmem:[#allocation7] sm:$0xff]
        %v278 = vld [vmem:[#allocation7 + $0x8] sm:$0xff]
        %v279 = vld [vmem:[#allocation7 + $0x10] sm:$0xff]
        %v280 = vld [vmem:[#allocation7 + $0x18] sm:$0xff]
        %v281 = vld [vmem:[#allocation7 + $0x20] sm:$0xff]
        %v282 = vld [vmem:[#allocation7 + $0x28] sm:$0xff]
        %v283 = vld [vmem:[#allocation7 + $0x30] sm:$0xff]
        %v284 = vld [vmem:[#allocation7 + $0x38] sm:$0xff]
        %v285 = vld [vmem:[#allocation7 + $0x40] sm:$0xff]
        %v286 = vld [vmem:[#allocation7 + $0x48] sm:$0xff]
        %v287 = vld [vmem:[#allocation7 + $0x50] sm:$0xff]
        %v288 = vld [vmem:[#allocation7 + $0x58] sm:$0xff]
        %v289 = vld [vmem:[#allocation7 + $0x60] sm:$0xff]
        %v290 = vld [vmem:[#allocation7 + $0x68] sm:$0xff]
        %v291 = vld [vmem:[#allocation7 + $0x70] sm:$0xff]
        %v292 = vld [vmem:[#allocation7 + $0x78] sm:$0xff]
        %v293 = vld [vmem:[#allocation8] sm:$0x1]
        %v294 = vmul.f32 %v259, %v259
        %v295 = vmul.f32 %v260, %v260
        %296 = vadd.xlane.f32.xlu0 %v294
        %v297 = vpop.xlane.xlu0 %296
        %298 = vadd.xlane.f32.xlu0 %v295
        %v299 = vpop.xlane.xlu0 %298
        %v300 = vmax.f32 %v297, 1e-24
        %v301 = vmax.f32 %v299, 1e-24
        %v302 = vrsqrt.pop %v300
        %v303 = vrsqrt.pop %v301
        %v304 = vmul.f32 %v259, %v302
        %v305 = vmul.f32 %v260, %v303
        %v307 = vlaneseq
        %v308 = vshrl.u32 %v307, 7
        %v309 = vsub.s32 0, %v308
        %v310 = vrot.slane %v293, %v309
        %312 = vmatprep.subr.mxu0 0.0
        %313 = vmatpush1.xpose.msra.mxu0 %v261
        %314 = vmatprep.subr.mxu0 0.0
        %315 = vmatpush1.xpose.msra.mxu0 %v262
        %316 = vmatprep.subr.mxu0 0.0
        %317 = vmatpush1.xpose.msra.mxu0 %v263
        %318 = vmatprep.subr.mxu0 0.0
        %319 = vmatpush1.xpose.msra.mxu0 %v264
        %320 = vmatprep.subr.mxu0 0.0
        %321 = vmatpush1.xpose.msra.mxu0 %v265
        %322 = vmatprep.subr.mxu0 0.0
        %323 = vmatpush1.xpose.msra.mxu0 %v266
        %324 = vmatprep.subr.mxu0 0.0
        %325 = vmatpush1.xpose.msra.mxu0 %v267
        %326 = vmatprep.subr.mxu0 0.0
        %327 = vmatpush1.xpose.msra.mxu0 %v268
        %328 = vmatprep.subr.mxu0 0.0
        %329 = vmatpush1.xpose.msra.mxu0 %v269
        %330 = vmatprep.subr.mxu0 0.0
        %331 = vmatpush1.xpose.msra.mxu0 %v270
        %332 = vmatprep.subr.mxu0 0.0
        %333 = vmatpush1.xpose.msra.mxu0 %v271
        %334 = vmatprep.subr.mxu0 0.0
        %335 = vmatpush1.xpose.msra.mxu0 %v272
        %336 = vmatprep.subr.mxu0 0.0
        %337 = vmatpush1.xpose.msra.mxu0 %v273
        %338 = vmatprep.subr.mxu0 0.0
        %339 = vmatpush1.xpose.msra.mxu0 %v274
        %340 = vmatprep.subr.mxu0 0.0
        %341 = vmatpush1.xpose.msra.mxu0 %v275
        %342 = vmatprep.subr.mxu0 0.0
        %343 = vmatpush1.xpose.msra.mxu0 %v276
        %344 = vmatprep.subr.mxu0 0.0
        %345 = vmatpush1.xpose.msra.mxu0 0.0
        %346 = vmatprep.subr.mxu0 0.0
        %347 = vmatpush1.xpose.msra.mxu0 0.0
        %348 = vmatprep.subr.mxu0 0.0
        %349 = vmatpush1.xpose.msra.mxu0 0.0
        %350 = vmatprep.subr.mxu0 0.0
        %351 = vmatpush1.xpose.msra.mxu0 0.0
        %352 = vmatprep.subr.mxu0 0.0
        %353 = vmatpush1.xpose.msra.mxu0 0.0
        %354 = vmatprep.subr.mxu0 0.0
        %355 = vmatpush1.xpose.msra.mxu0 0.0
        %356 = vmatprep.subr.mxu0 0.0
        %357 = vmatpush1.xpose.msra.mxu0 0.0
        %358 = vmatprep.subr.mxu0 0.0
        %359 = vmatpush1.xpose.msra.mxu0 0.0
        %360 = vmatprep.subr.mxu0 0.0
        %361 = vmatpush1.xpose.msra.mxu0 0.0
        %362 = vmatprep.subr.mxu0 0.0
        %363 = vmatpush1.xpose.msra.mxu0 0.0
        %364 = vmatprep.subr.mxu0 0.0
        %365 = vmatpush1.xpose.msra.mxu0 0.0
        %366 = vmatprep.subr.mxu0 0.0
        %367 = vmatpush1.xpose.msra.mxu0 0.0
        %368 = vmatprep.subr.mxu0 0.0
        %369 = vmatpush1.xpose.msra.mxu0 0.0
        %370 = vmatprep.subr.mxu0 0.0
        %371 = vmatpush1.xpose.msra.mxu0 0.0
        %372 = vmatprep.subr.mxu0 0.0
        %373 = vmatpush1.xpose.msra.mxu0 0.0
        %374 = vmatprep.subr.mxu0 0.0
        %375 = vmatpush1.xpose.msra.mxu0 0.0
        %376 = vmatprep.mubr.f32.mxu0 0.0
        %377 = vmatmul.mubr.f32.gmra.mrb[0].mxu0 %v304
        %v378 = vpop.f32.mrb[0].mxu0
        %v379 = vadd.f32 %v310, %v378
        %v380 = vpop.f32.mrb[0].mxu0
        %381 = vmatprep.mubr.f32.mxu0 0.0
        %382 = vmatmul.mubr.f32.gmra.mrb[0].mxu0 %v305
        %v383 = vpop.f32.mrb[0].mxu0
        %v384 = vadd.f32 %v310, %v383
        %v385 = vpop.f32.mrb[0].mxu0
        %386 = vdwg.mxu0
        %387 = vmax.xlane.f32.xlu0 %v379
        %v388 = vpop.xlane.xlu0 %387
        %389 = vmax.xlane.f32.xlu0 %v384
        %v390 = vpop.xlane.xlu0 %389
        %v391 = vsub.f32 %v379, %v388
        %v392 = vsub.f32 %v384, %v390
        %v393 = vmul.f32 %v391, 1.442695
        %v394 = vpow.pop %v393
        %v395 = vmul.f32 %v392, 1.442695
        %v396 = vpow.pop %v395
        %397 = vadd.xlane.f32.xlu0 %v394
        %v398 = vpop.xlane.xlu0 %397
        %399 = vadd.xlane.f32.xlu0 %v396
        %v400 = vpop.xlane.xlu0 %399
        %v401 = vrcp.pop %v398
        %v402 = vmul.f32 1.0, %v401
        %v403 = vrcp.pop %v400
        %v404 = vmul.f32 1.0, %v403
        %v405 = vmul.f32 %v304, %v402
        %v406 = vmul.f32 %v305, %v404
        %407 = vxpose.xlu0.b32.start [1/16] %v394, 128
        %408 = vxpose.xlu0.b32.cont [2/16] %v396, 128
        %409 = vxpose.xlu0.b32.cont [3/16] 0.0, 128
        %410 = vxpose.xlu0.b32.cont [4/16] 0.0, 128
        %411 = vxpose.xlu0.b32.cont [5/16] 0.0, 128
        %412 = vxpose.xlu0.b32.cont [6/16] 0.0, 128
        %413 = vxpose.xlu0.b32.cont [7/16] 0.0, 128
        %414 = vxpose.xlu0.b32.cont [8/16] 0.0, 128
        %415 = vxpose.xlu0.b32.cont [9/16] 0.0, 128
        %416 = vxpose.xlu0.b32.cont [10/16] 0.0, 128
        %417 = vxpose.xlu0.b32.cont [11/16] 0.0, 128
        %418 = vxpose.xlu0.b32.cont [12/16] 0.0, 128
        %419 = vxpose.xlu0.b32.cont [13/16] 0.0, 128
        %420 = vxpose.xlu0.b32.cont [14/16] 0.0, 128
        %421 = vxpose.xlu0.b32.cont [15/16] 0.0, 128
        %422 = vxpose.xlu0.b32.end [16/16] 0.0, 128
        %v423 = vpop.trf.xlu0
        %v424 = vpop.trf.xlu0
        %v425 = vpop.trf.xlu0
        %v426 = vpop.trf.xlu0
        %v427 = vpop.trf.xlu0
        %v428 = vpop.trf.xlu0
        %v429 = vpop.trf.xlu0
        %v430 = vpop.trf.xlu0
        %v431 = vpop.trf.xlu0
        %v432 = vpop.trf.xlu0
        %v433 = vpop.trf.xlu0
        %v434 = vpop.trf.xlu0
        %v435 = vpop.trf.xlu0
        %v436 = vpop.trf.xlu0
        %v437 = vpop.trf.xlu0
        %v438 = vpop.trf.xlu0
        %vm439 = vcmask 130048
        %v441 = vsel %vm439, %v423, 0
        %v444 = vsel %vm439, %v424, 0
        %v447 = vsel %vm439, %v425, 0
        %v450 = vsel %vm439, %v426, 0
        %v453 = vsel %vm439, %v427, 0
        %v456 = vsel %vm439, %v428, 0
        %v459 = vsel %vm439, %v429, 0
        %v462 = vsel %vm439, %v430, 0
        %v465 = vsel %vm439, %v431, 0
        %v468 = vsel %vm439, %v432, 0
        %v471 = vsel %vm439, %v433, 0
        %v474 = vsel %vm439, %v434, 0
        %v477 = vsel %vm439, %v435, 0
        %v480 = vsel %vm439, %v436, 0
        %v483 = vsel %vm439, %v437, 0
        %v486 = vsel %vm439, %v438, 0
        %488 = vmatprep.subr.mxu0 0.0
        %489 = vmatpush1.msra.mxu0 %v405
        %490 = vmatprep.subr.mxu0 0.0
        %491 = vmatpush1.msra.mxu0 %v406
        %492 = vmatprep.subr.mxu0 0.0
        %493 = vmatpush1.msra.mxu0 0.0
        %494 = vmatprep.subr.mxu0 0.0
        %495 = vmatpush1.msra.mxu0 0.0
        %496 = vmatprep.subr.mxu0 0.0
        %497 = vmatpush1.msra.mxu0 0.0
        %498 = vmatprep.subr.mxu0 0.0
        %499 = vmatpush1.msra.mxu0 0.0
        %500 = vmatprep.subr.mxu0 0.0
        %501 = vmatpush1.msra.mxu0 0.0
        %502 = vmatprep.subr.mxu0 0.0
        %503 = vmatpush1.msra.mxu0 0.0
        %504 = vmatprep.subr.mxu0 0.0
        %505 = vmatpush1.msra.mxu0 0.0
        %506 = vmatprep.subr.mxu0 0.0
        %507 = vmatpush1.msra.mxu0 0.0
        %508 = vmatprep.subr.mxu0 0.0
        %509 = vmatpush1.msra.mxu0 0.0
        %510 = vmatprep.subr.mxu0 0.0
        %511 = vmatpush1.msra.mxu0 0.0
        %512 = vmatprep.subr.mxu0 0.0
        %513 = vmatpush1.msra.mxu0 0.0
        %514 = vmatprep.subr.mxu0 0.0
        %515 = vmatpush1.msra.mxu0 0.0
        %516 = vmatprep.subr.mxu0 0.0
        %517 = vmatpush1.msra.mxu0 0.0
        %518 = vmatprep.subr.mxu0 0.0
        %519 = vmatpush1.msra.mxu0 0.0
        %520 = vmatprep.subr.mxu0 0.0
        %521 = vmatpush1.msra.mxu0 0.0
        %522 = vmatprep.subr.mxu0 0.0
        %523 = vmatpush1.msra.mxu0 0.0
        %524 = vmatprep.subr.mxu0 0.0
        %525 = vmatpush1.msra.mxu0 0.0
        %526 = vmatprep.subr.mxu0 0.0
        %527 = vmatpush1.msra.mxu0 0.0
        %528 = vmatprep.subr.mxu0 0.0
        %529 = vmatpush1.msra.mxu0 0.0
        %530 = vmatprep.subr.mxu0 0.0
        %531 = vmatpush1.msra.mxu0 0.0
        %532 = vmatprep.subr.mxu0 0.0
        %533 = vmatpush1.msra.mxu0 0.0
        %534 = vmatprep.subr.mxu0 0.0
        %535 = vmatpush1.msra.mxu0 0.0
        %536 = vmatprep.subr.mxu0 0.0
        %537 = vmatpush1.msra.mxu0 0.0
        %538 = vmatprep.subr.mxu0 0.0
        %539 = vmatpush1.msra.mxu0 0.0
        %540 = vmatprep.subr.mxu0 0.0
        %541 = vmatpush1.msra.mxu0 0.0
        %542 = vmatprep.subr.mxu0 0.0
        %543 = vmatpush1.msra.mxu0 0.0
        %544 = vmatprep.subr.mxu0 0.0
        %545 = vmatpush1.msra.mxu0 0.0
        %546 = vmatprep.subr.mxu0 0.0
        %547 = vmatpush1.msra.mxu0 0.0
        %548 = vmatprep.subr.mxu0 0.0
        %549 = vmatpush1.msra.mxu0 0.0
        %550 = vmatprep.subr.mxu0 0.0
        %551 = vmatpush1.msra.mxu0 0.0
        %552 = vmatprep.mubr.f32.mxu0 0.0
        %553 = vmatmul.mubr.f32.gmra.mrb[0].mxu0 %v441
        %v554 = vpop.f32.mrb[0].mxu0
        %v555 = vadd.f32 0.0, %v554
        %v556 = vpop.f32.mrb[0].mxu0
        %557 = vmatprep.mubr.f32.mxu0 0.0
        %558 = vmatmul.mubr.f32.gmra.mrb[0].mxu0 %v444
        %v559 = vpop.f32.mrb[0].mxu0
        %v560 = vadd.f32 0.0, %v559
        %v561 = vpop.f32.mrb[0].mxu0
        %562 = vmatprep.mubr.f32.mxu0 0.0
        %563 = vmatmul.mubr.f32.gmra.mrb[0].mxu0 %v447
        %v564 = vpop.f32.mrb[0].mxu0
        %v565 = vadd.f32 0.0, %v564
        %v566 = vpop.f32.mrb[0].mxu0
        %567 = vmatprep.mubr.f32.mxu0 0.0
        %568 = vmatmul.mubr.f32.gmra.mrb[0].mxu0 %v450
        %v569 = vpop.f32.mrb[0].mxu0
        %v570 = vadd.f32 0.0, %v569
        %v571 = vpop.f32.mrb[0].mxu0
        %572 = vmatprep.mubr.f32.mxu0 0.0
        %573 = vmatmul.mubr.f32.gmra.mrb[0].mxu0 %v453
        %v574 = vpop.f32.mrb[0].mxu0
        %v575 = vadd.f32 0.0, %v574
        %v576 = vpop.f32.mrb[0].mxu0
        %577 = vmatprep.mubr.f32.mxu0 0.0
        %578 = vmatmul.mubr.f32.gmra.mrb[0].mxu0 %v456
        %v579 = vpop.f32.mrb[0].mxu0
        %v580 = vadd.f32 0.0, %v579
        %v581 = vpop.f32.mrb[0].mxu0
        %582 = vmatprep.mubr.f32.mxu0 0.0
        %583 = vmatmul.mubr.f32.gmra.mrb[0].mxu0 %v459
        %v584 = vpop.f32.mrb[0].mxu0
        %v585 = vadd.f32 0.0, %v584
        %v586 = vpop.f32.mrb[0].mxu0
        %587 = vmatprep.mubr.f32.mxu0 0.0
        %588 = vmatmul.mubr.f32.gmra.mrb[0].mxu0 %v462
        %v589 = vpop.f32.mrb[0].mxu0
        %v590 = vadd.f32 0.0, %v589
        %v591 = vpop.f32.mrb[0].mxu0
        %592 = vmatprep.mubr.f32.mxu0 0.0
        %593 = vmatmul.mubr.f32.gmra.mrb[0].mxu0 %v465
        %v594 = vpop.f32.mrb[0].mxu0
        %v595 = vadd.f32 0.0, %v594
        %v596 = vpop.f32.mrb[0].mxu0
        %597 = vmatprep.mubr.f32.mxu0 0.0
        %598 = vmatmul.mubr.f32.gmra.mrb[0].mxu0 %v468
        %v599 = vpop.f32.mrb[0].mxu0
        %v600 = vadd.f32 0.0, %v599
        %v601 = vpop.f32.mrb[0].mxu0
        %602 = vmatprep.mubr.f32.mxu0 0.0
        %603 = vmatmul.mubr.f32.gmra.mrb[0].mxu0 %v471
        %v604 = vpop.f32.mrb[0].mxu0
        %v605 = vadd.f32 0.0, %v604
        %v606 = vpop.f32.mrb[0].mxu0
        %607 = vmatprep.mubr.f32.mxu0 0.0
        %608 = vmatmul.mubr.f32.gmra.mrb[0].mxu0 %v474
        %v609 = vpop.f32.mrb[0].mxu0
        %v610 = vadd.f32 0.0, %v609
        %v611 = vpop.f32.mrb[0].mxu0
        %612 = vmatprep.mubr.f32.mxu0 0.0
        %613 = vmatmul.mubr.f32.gmra.mrb[0].mxu0 %v477
        %v614 = vpop.f32.mrb[0].mxu0
        %v615 = vadd.f32 0.0, %v614
        %v616 = vpop.f32.mrb[0].mxu0
        %617 = vmatprep.mubr.f32.mxu0 0.0
        %618 = vmatmul.mubr.f32.gmra.mrb[0].mxu0 %v480
        %v619 = vpop.f32.mrb[0].mxu0
        %v620 = vadd.f32 0.0, %v619
        %v621 = vpop.f32.mrb[0].mxu0
        %622 = vmatprep.mubr.f32.mxu0 0.0
        %623 = vmatmul.mubr.f32.gmra.mrb[0].mxu0 %v483
        %v624 = vpop.f32.mrb[0].mxu0
        %v625 = vadd.f32 0.0, %v624
        %v626 = vpop.f32.mrb[0].mxu0
        %627 = vmatprep.mubr.f32.mxu0 0.0
        %628 = vmatmul.mubr.f32.gmra.mrb[0].mxu0 %v486
        %v629 = vpop.f32.mrb[0].mxu0
        %v630 = vadd.f32 0.0, %v629
        %v631 = vpop.f32.mrb[0].mxu0
        %632 = vdwg.mxu0
        %633 = vmatprep.subr.mxu0 0.0
        %634 = vmatpush1.msra.mxu0 %v402
        %635 = vmatprep.subr.mxu0 0.0
        %636 = vmatpush1.msra.mxu0 %v404
        %637 = vmatprep.subr.mxu0 0.0
        %638 = vmatpush1.msra.mxu0 0.0
        %639 = vmatprep.subr.mxu0 0.0
        %640 = vmatpush1.msra.mxu0 0.0
        %641 = vmatprep.subr.mxu0 0.0
        %642 = vmatpush1.msra.mxu0 0.0
        %643 = vmatprep.subr.mxu0 0.0
        %644 = vmatpush1.msra.mxu0 0.0
        %645 = vmatprep.subr.mxu0 0.0
        %646 = vmatpush1.msra.mxu0 0.0
        %647 = vmatprep.subr.mxu0 0.0
        %648 = vmatpush1.msra.mxu0 0.0
        %649 = vmatprep.subr.mxu0 0.0
        %650 = vmatpush1.msra.mxu0 0.0
        %651 = vmatprep.subr.mxu0 0.0
        %652 = vmatpush1.msra.mxu0 0.0
        %653 = vmatprep.subr.mxu0 0.0
        %654 = vmatpush1.msra.mxu0 0.0
        %655 = vmatprep.subr.mxu0 0.0
        %656 = vmatpush1.msra.mxu0 0.0
        %657 = vmatprep.subr.mxu0 0.0
        %658 = vmatpush1.msra.mxu0 0.0
        %659 = vmatprep.subr.mxu0 0.0
        %660 = vmatpush1.msra.mxu0 0.0
        %661 = vmatprep.subr.mxu0 0.0
        %662 = vmatpush1.msra.mxu0 0.0
        %663 = vmatprep.subr.mxu0 0.0
        %664 = vmatpush1.msra.mxu0 0.0
        %665 = vmatprep.subr.mxu0 0.0
        %666 = vmatpush1.msra.mxu0 0.0
        %667 = vmatprep.subr.mxu0 0.0
        %668 = vmatpush1.msra.mxu0 0.0
        %669 = vmatprep.subr.mxu0 0.0
        %670 = vmatpush1.msra.mxu0 0.0
        %671 = vmatprep.subr.mxu0 0.0
        %672 = vmatpush1.msra.mxu0 0.0
        %673 = vmatprep.subr.mxu0 0.0
        %674 = vmatpush1.msra.mxu0 0.0
        %675 = vmatprep.subr.mxu0 0.0
        %676 = vmatpush1.msra.mxu0 0.0
        %677 = vmatprep.subr.mxu0 0.0
        %678 = vmatpush1.msra.mxu0 0.0
        %679 = vmatprep.subr.mxu0 0.0
        %680 = vmatpush1.msra.mxu0 0.0
        %681 = vmatprep.subr.mxu0 0.0
        %682 = vmatpush1.msra.mxu0 0.0
        %683 = vmatprep.subr.mxu0 0.0
        %684 = vmatpush1.msra.mxu0 0.0
        %685 = vmatprep.subr.mxu0 0.0
        %686 = vmatpush1.msra.mxu0 0.0
        %687 = vmatprep.subr.mxu0 0.0
        %688 = vmatpush1.msra.mxu0 0.0
        %689 = vmatprep.subr.mxu0 0.0
        %690 = vmatpush1.msra.mxu0 0.0
        %691 = vmatprep.subr.mxu0 0.0
        %692 = vmatpush1.msra.mxu0 0.0
        %693 = vmatprep.subr.mxu0 0.0
        %694 = vmatpush1.msra.mxu0 0.0
        %695 = vmatprep.subr.mxu0 0.0
        %696 = vmatpush1.msra.mxu0 0.0
        %697 = vmatprep.mubr.f32.mxu0 0.0
        %698 = vmatmul.mubr.f32.gmra.mrb[0].mxu0 %v441
        %v699 = vpop.f32.mrb[0].mxu0
        %v700 = vadd.f32 0.0, %v699
        %v701 = vpop.f32.mrb[0].mxu0
        %702 = vmatprep.mubr.f32.mxu0 0.0
        %703 = vmatmul.mubr.f32.gmra.mrb[0].mxu0 %v444
        %v704 = vpop.f32.mrb[0].mxu0
        %v705 = vadd.f32 0.0, %v704
        %v706 = vpop.f32.mrb[0].mxu0
        %707 = vmatprep.mubr.f32.mxu0 0.0
        %708 = vmatmul.mubr.f32.gmra.mrb[0].mxu0 %v447
        %v709 = vpop.f32.mrb[0].mxu0
        %v710 = vadd.f32 0.0, %v709
        %v711 = vpop.f32.mrb[0].mxu0
        %712 = vmatprep.mubr.f32.mxu0 0.0
        %713 = vmatmul.mubr.f32.gmra.mrb[0].mxu0 %v450
        %v714 = vpop.f32.mrb[0].mxu0
        %v715 = vadd.f32 0.0, %v714
        %v716 = vpop.f32.mrb[0].mxu0
        %717 = vmatprep.mubr.f32.mxu0 0.0
        %718 = vmatmul.mubr.f32.gmra.mrb[0].mxu0 %v453
        %v719 = vpop.f32.mrb[0].mxu0
        %v720 = vadd.f32 0.0, %v719
        %v721 = vpop.f32.mrb[0].mxu0
        %722 = vmatprep.mubr.f32.mxu0 0.0
        %723 = vmatmul.mubr.f32.gmra.mrb[0].mxu0 %v456
        %v724 = vpop.f32.mrb[0].mxu0
        %v725 = vadd.f32 0.0, %v724
        %v726 = vpop.f32.mrb[0].mxu0
        %727 = vmatprep.mubr.f32.mxu0 0.0
        %728 = vmatmul.mubr.f32.gmra.mrb[0].mxu0 %v459
        %v729 = vpop.f32.mrb[0].mxu0
        %v730 = vadd.f32 0.0, %v729
        %v731 = vpop.f32.mrb[0].mxu0
        %732 = vmatprep.mubr.f32.mxu0 0.0
        %733 = vmatmul.mubr.f32.gmra.mrb[0].mxu0 %v462
        %v734 = vpop.f32.mrb[0].mxu0
        %v735 = vadd.f32 0.0, %v734
        %v736 = vpop.f32.mrb[0].mxu0
        %737 = vmatprep.mubr.f32.mxu0 0.0
        %738 = vmatmul.mubr.f32.gmra.mrb[0].mxu0 %v465
        %v739 = vpop.f32.mrb[0].mxu0
        %v740 = vadd.f32 0.0, %v739
        %v741 = vpop.f32.mrb[0].mxu0
        %742 = vmatprep.mubr.f32.mxu0 0.0
        %743 = vmatmul.mubr.f32.gmra.mrb[0].mxu0 %v468
        %v744 = vpop.f32.mrb[0].mxu0
        %v745 = vadd.f32 0.0, %v744
        %v746 = vpop.f32.mrb[0].mxu0
        %747 = vmatprep.mubr.f32.mxu0 0.0
        %748 = vmatmul.mubr.f32.gmra.mrb[0].mxu0 %v471
        %v749 = vpop.f32.mrb[0].mxu0
        %v750 = vadd.f32 0.0, %v749
        %v751 = vpop.f32.mrb[0].mxu0
        %752 = vmatprep.mubr.f32.mxu0 0.0
        %753 = vmatmul.mubr.f32.gmra.mrb[0].mxu0 %v474
        %v754 = vpop.f32.mrb[0].mxu0
        %v755 = vadd.f32 0.0, %v754
        %v756 = vpop.f32.mrb[0].mxu0
        %757 = vmatprep.mubr.f32.mxu0 0.0
        %758 = vmatmul.mubr.f32.gmra.mrb[0].mxu0 %v477
        %v759 = vpop.f32.mrb[0].mxu0
        %v760 = vadd.f32 0.0, %v759
        %v761 = vpop.f32.mrb[0].mxu0
        %762 = vmatprep.mubr.f32.mxu0 0.0
        %763 = vmatmul.mubr.f32.gmra.mrb[0].mxu0 %v480
        %v764 = vpop.f32.mrb[0].mxu0
        %v765 = vadd.f32 0.0, %v764
        %v766 = vpop.f32.mrb[0].mxu0
        %767 = vmatprep.mubr.f32.mxu0 0.0
        %768 = vmatmul.mubr.f32.gmra.mrb[0].mxu0 %v483
        %v769 = vpop.f32.mrb[0].mxu0
        %v770 = vadd.f32 0.0, %v769
        %v771 = vpop.f32.mrb[0].mxu0
        %772 = vmatprep.mubr.f32.mxu0 0.0
        %773 = vmatmul.mubr.f32.gmra.mrb[0].mxu0 %v486
        %v774 = vpop.f32.mrb[0].mxu0
        %v775 = vadd.f32 0.0, %v774
        %v776 = vpop.f32.mrb[0].mxu0
        %777 = vdwg.mxu0
        %779 = vset.pattern.permute.xlu0 0
        %780 = vperm.xlu0 %779, %v700
        %v781 = vpop.permute.xlu0 %780
        %784 = vset.pattern.permute.xlu0 0
        %785 = vperm.xlu0 %784, %v705
        %v786 = vpop.permute.xlu0 %785
        %789 = vset.pattern.permute.xlu0 0
        %790 = vperm.xlu0 %789, %v710
        %v791 = vpop.permute.xlu0 %790
        %794 = vset.pattern.permute.xlu0 0
        %795 = vperm.xlu0 %794, %v715
        %v796 = vpop.permute.xlu0 %795
        %799 = vset.pattern.permute.xlu0 0
        %800 = vperm.xlu0 %799, %v720
        %v801 = vpop.permute.xlu0 %800
        %804 = vset.pattern.permute.xlu0 0
        %805 = vperm.xlu0 %804, %v725
        %v806 = vpop.permute.xlu0 %805
        %809 = vset.pattern.permute.xlu0 0
        %810 = vperm.xlu0 %809, %v730
        %v811 = vpop.permute.xlu0 %810
        %814 = vset.pattern.permute.xlu0 0
        %815 = vperm.xlu0 %814, %v735
        %v816 = vpop.permute.xlu0 %815
        %819 = vset.pattern.permute.xlu0 0
        %820 = vperm.xlu0 %819, %v740
        %v821 = vpop.permute.xlu0 %820
        %824 = vset.pattern.permute.xlu0 0
        %825 = vperm.xlu0 %824, %v745
        %v826 = vpop.permute.xlu0 %825
        %829 = vset.pattern.permute.xlu0 0
        %830 = vperm.xlu0 %829, %v750
        %v831 = vpop.permute.xlu0 %830
        %834 = vset.pattern.permute.xlu0 0
        %835 = vperm.xlu0 %834, %v755
        %v836 = vpop.permute.xlu0 %835
        %839 = vset.pattern.permute.xlu0 0
        %840 = vperm.xlu0 %839, %v760
        %v841 = vpop.permute.xlu0 %840
        %844 = vset.pattern.permute.xlu0 0
        %845 = vperm.xlu0 %844, %v765
        %v846 = vpop.permute.xlu0 %845
        %849 = vset.pattern.permute.xlu0 0
        %850 = vperm.xlu0 %849, %v770
        %v851 = vpop.permute.xlu0 %850
        %854 = vset.pattern.permute.xlu0 0
        %855 = vperm.xlu0 %854, %v775
        %v856 = vpop.permute.xlu0 %855
        %v858 = vmul.f32 %v277, %v781
        %v859 = vmul.f32 %v278, %v786
        %v860 = vmul.f32 %v279, %v791
        %v861 = vmul.f32 %v280, %v796
        %v862 = vmul.f32 %v281, %v801
        %v863 = vmul.f32 %v282, %v806
        %v864 = vmul.f32 %v283, %v811
        %v865 = vmul.f32 %v284, %v816
        %v866 = vmul.f32 %v285, %v821
        %v867 = vmul.f32 %v286, %v826
        %v868 = vmul.f32 %v287, %v831
        %v869 = vmul.f32 %v288, %v836
        %v870 = vmul.f32 %v289, %v841
        %v871 = vmul.f32 %v290, %v846
        %v872 = vmul.f32 %v291, %v851
        %v873 = vmul.f32 %v292, %v856
        %v874 = vsub.f32 %v555, %v858
        %v875 = vsub.f32 %v560, %v859
        %v876 = vsub.f32 %v565, %v860
        %v877 = vsub.f32 %v570, %v861
        %v878 = vsub.f32 %v575, %v862
        %v879 = vsub.f32 %v580, %v863
        %v880 = vsub.f32 %v585, %v864
        %v881 = vsub.f32 %v590, %v865
        %v882 = vsub.f32 %v595, %v866
        %v883 = vsub.f32 %v600, %v867
        %v884 = vsub.f32 %v605, %v868
        %v885 = vsub.f32 %v610, %v869
        %v886 = vsub.f32 %v615, %v870
        %v887 = vsub.f32 %v620, %v871
        %v888 = vsub.f32 %v625, %v872
        %v889 = vsub.f32 %v630, %v873
        %v890 = vmul.f32 %v874, %v874
        %v891 = vmul.f32 %v875, %v875
        %v892 = vmul.f32 %v876, %v876
        %v893 = vmul.f32 %v877, %v877
        %v894 = vmul.f32 %v878, %v878
        %v895 = vmul.f32 %v879, %v879
        %v896 = vmul.f32 %v880, %v880
        %v897 = vmul.f32 %v881, %v881
        %v898 = vmul.f32 %v882, %v882
        %v899 = vmul.f32 %v883, %v883
        %v900 = vmul.f32 %v884, %v884
        %v901 = vmul.f32 %v885, %v885
        %v902 = vmul.f32 %v886, %v886
        %v903 = vmul.f32 %v887, %v887
        %v904 = vmul.f32 %v888, %v888
        %v905 = vmul.f32 %v889, %v889
        %906 = vadd.xlane.f32.xlu0 %v890
        %v907 = vpop.xlane.xlu0 %906
        %908 = vadd.xlane.f32.xlu0 %v891
        %v909 = vpop.xlane.xlu0 %908
        %910 = vadd.xlane.f32.xlu0 %v892
        %v911 = vpop.xlane.xlu0 %910
        %912 = vadd.xlane.f32.xlu0 %v893
        %v913 = vpop.xlane.xlu0 %912
        %914 = vadd.xlane.f32.xlu0 %v894
        %v915 = vpop.xlane.xlu0 %914
        %916 = vadd.xlane.f32.xlu0 %v895
        %v917 = vpop.xlane.xlu0 %916
        %918 = vadd.xlane.f32.xlu0 %v896
        %v919 = vpop.xlane.xlu0 %918
        %920 = vadd.xlane.f32.xlu0 %v897
        %v921 = vpop.xlane.xlu0 %920
        %922 = vadd.xlane.f32.xlu0 %v898
        %v923 = vpop.xlane.xlu0 %922
        %924 = vadd.xlane.f32.xlu0 %v899
        %v925 = vpop.xlane.xlu0 %924
        %926 = vadd.xlane.f32.xlu0 %v900
        %v927 = vpop.xlane.xlu0 %926
        %928 = vadd.xlane.f32.xlu0 %v901
        %v929 = vpop.xlane.xlu0 %928
        %930 = vadd.xlane.f32.xlu0 %v902
        %v931 = vpop.xlane.xlu0 %930
        %932 = vadd.xlane.f32.xlu0 %v903
        %v933 = vpop.xlane.xlu0 %932
        %934 = vadd.xlane.f32.xlu0 %v904
        %v935 = vpop.xlane.xlu0 %934
        %936 = vadd.xlane.f32.xlu0 %v905
        %v937 = vpop.xlane.xlu0 %936
        %v938 = vmax.f32 %v907, 1e-24
        %v939 = vmax.f32 %v909, 1e-24
        %v940 = vmax.f32 %v911, 1e-24
        %v941 = vmax.f32 %v913, 1e-24
        %v942 = vmax.f32 %v915, 1e-24
        %v943 = vmax.f32 %v917, 1e-24
        %v944 = vmax.f32 %v919, 1e-24
        %v945 = vmax.f32 %v921, 1e-24
        %v946 = vmax.f32 %v923, 1e-24
        %v947 = vmax.f32 %v925, 1e-24
        %v948 = vmax.f32 %v927, 1e-24
        %v949 = vmax.f32 %v929, 1e-24
        %v950 = vmax.f32 %v931, 1e-24
        %v951 = vmax.f32 %v933, 1e-24
        %v952 = vmax.f32 %v935, 1e-24
        %v953 = vmax.f32 %v937, 1e-24
        %v954 = vrsqrt.pop %v938
        %v955 = vrsqrt.pop %v939
        %v956 = vrsqrt.pop %v940
        %v957 = vrsqrt.pop %v941
        %v958 = vrsqrt.pop %v942
        %v959 = vrsqrt.pop %v943
        %v960 = vrsqrt.pop %v944
        %v961 = vrsqrt.pop %v945
        %v962 = vrsqrt.pop %v946
        %v963 = vrsqrt.pop %v947
        %v964 = vrsqrt.pop %v948
        %v965 = vrsqrt.pop %v949
        %v966 = vrsqrt.pop %v950
        %v967 = vrsqrt.pop %v951
        %v968 = vrsqrt.pop %v952
        %v969 = vrsqrt.pop %v953
        %v970 = vmul.f32 %v907, %v954
        %v971 = vmul.f32 %v909, %v955
        %v972 = vmul.f32 %v911, %v956
        %v973 = vmul.f32 %v913, %v957
        %v974 = vmul.f32 %v915, %v958
        %v975 = vmul.f32 %v917, %v959
        %v976 = vmul.f32 %v919, %v960
        %v977 = vmul.f32 %v921, %v961
        %v978 = vmul.f32 %v923, %v962
        %v979 = vmul.f32 %v925, %v963
        %v980 = vmul.f32 %v927, %v964
        %v981 = vmul.f32 %v929, %v965
        %v982 = vmul.f32 %v931, %v966
        %v983 = vmul.f32 %v933, %v967
        %v984 = vmul.f32 %v935, %v968
        %v985 = vmul.f32 %v937, %v969
        %v986 = vmul.f32 %v970, %v954
        %v987 = vmul.f32 %v971, %v955
        %v988 = vmul.f32 %v972, %v956
        %v989 = vmul.f32 %v973, %v957
        %v990 = vmul.f32 %v974, %v958
        %v991 = vmul.f32 %v975, %v959
        %v992 = vmul.f32 %v976, %v960
        %v993 = vmul.f32 %v977, %v961
        %v994 = vmul.f32 %v978, %v962
        %v995 = vmul.f32 %v979, %v963
        %v996 = vmul.f32 %v980, %v964
        %v997 = vmul.f32 %v981, %v965
        %v998 = vmul.f32 %v982, %v966
        %v999 = vmul.f32 %v983, %v967
        %v1000 = vmul.f32 %v984, %v968
        %v1001 = vmul.f32 %v985, %v969
        %v1002 = vadd.f32 %v986, %v987
        %v1003 = vadd.f32 %v1002, %v988
        %v1004 = vadd.f32 %v1003, %v989
        %v1005 = vadd.f32 %v1004, %v990
        %v1006 = vadd.f32 %v1005, %v991
        %v1007 = vadd.f32 %v1006, %v992
        %v1008 = vadd.f32 %v1007, %v993
        %v1009 = vadd.f32 %v1008, %v994
        %v1010 = vadd.f32 %v1009, %v995
        %v1011 = vadd.f32 %v1010, %v996
        %v1012 = vadd.f32 %v1011, %v997
        %v1013 = vadd.f32 %v1012, %v998
        %v1014 = vadd.f32 %v1013, %v999
        %v1015 = vadd.f32 %v1014, %v1000
        %v1016 = vadd.f32 %v1015, %v1001
        %v1017 = vrot.slane %v1016, 4
        %v1018 = vadd.f32 %v1016, %v1017
        %v1019 = vrot.slane %v1018, 2
        %v1020 = vadd.f32 %v1018, %v1019
        %v1021 = vrot.slane %v1020, 1
        %v1022 = vadd.f32 %v1020, %v1021
        %v1023 = vmax.f32 %v1022, 1e-24
        %v1024 = vrsqrt.pop %v1023
        %v1025 = vmul.f32 %v954, %v1024
        %v1026 = vmul.f32 %v955, %v1024
        %v1027 = vmul.f32 %v956, %v1024
        %v1028 = vmul.f32 %v957, %v1024
        %v1029 = vmul.f32 %v958, %v1024
        %v1030 = vmul.f32 %v959, %v1024
        %v1031 = vmul.f32 %v960, %v1024
        %v1032 = vmul.f32 %v961, %v1024
        %v1033 = vmul.f32 %v962, %v1024
        %v1034 = vmul.f32 %v963, %v1024
        %v1035 = vmul.f32 %v964, %v1024
        %v1036 = vmul.f32 %v965, %v1024
        %v1037 = vmul.f32 %v966, %v1024
        %v1038 = vmul.f32 %v967, %v1024
        %v1039 = vmul.f32 %v968, %v1024
        %v1040 = vmul.f32 %v969, %v1024
        %v1041 = vmul.f32 %v874, %v1025
        %v1042 = vmul.f32 %v875, %v1026
        %v1043 = vmul.f32 %v876, %v1027
        %v1044 = vmul.f32 %v877, %v1028
        %v1045 = vmul.f32 %v878, %v1029
        %v1046 = vmul.f32 %v879, %v1030
        %v1047 = vmul.f32 %v880, %v1031
        %v1048 = vmul.f32 %v881, %v1032
        %v1049 = vmul.f32 %v882, %v1033
        %v1050 = vmul.f32 %v883, %v1034
        %v1051 = vmul.f32 %v884, %v1035
        %v1052 = vmul.f32 %v885, %v1036
        %v1053 = vmul.f32 %v886, %v1037
        %v1054 = vmul.f32 %v887, %v1038
        %v1055 = vmul.f32 %v888, %v1039
        %v1056 = vmul.f32 %v889, %v1040
        %1057 = vst [vmem:[%s257] sm:$0xff] %v1041
        %1058 = vst [vmem:[%s257 + $0x8] sm:$0xff] %v1042
        %1059 = vst [vmem:[%s257 + $0x10] sm:$0xff] %v1043
        %1060 = vst [vmem:[%s257 + $0x18] sm:$0xff] %v1044
        %1061 = vst [vmem:[%s257 + $0x20] sm:$0xff] %v1045
        %1062 = vst [vmem:[%s257 + $0x28] sm:$0xff] %v1046
        %1063 = vst [vmem:[%s257 + $0x30] sm:$0xff] %v1047
        %1064 = vst [vmem:[%s257 + $0x38] sm:$0xff] %v1048
        %1065 = vst [vmem:[%s257 + $0x40] sm:$0xff] %v1049
        %1066 = vst [vmem:[%s257 + $0x48] sm:$0xff] %v1050
        %1067 = vst [vmem:[%s257 + $0x50] sm:$0xff] %v1051
        %1068 = vst [vmem:[%s257 + $0x58] sm:$0xff] %v1052
        %1069 = vst [vmem:[%s257 + $0x60] sm:$0xff] %v1053
        %1070 = vst [vmem:[%s257 + $0x68] sm:$0xff] %v1054
        %1071 = vst [vmem:[%s257 + $0x70] sm:$0xff] %v1055
        %1072 = vst [vmem:[%s257 + $0x78] sm:$0xff] %v1056
        %s1073 = sand.u32 %s120, 1
        %s1074 = scalar_lea.sflag [#allocation4], %s1073
        %s1075 = sand.u32 %s120, 1
        %s1076 = smul.addr %s1075, 128
        %s1077 = scalar_lea.vmem [#allocation10], %s1076
        // Predicated region
        $region53: #{tpu_custom_call.1} parent=35 // pred_check
          %p1078 = pneg %p130
        $region54: #{tpu_custom_call.1} parent=35 // pred_check_branch
          %1080 = sbr.rel (%p1078) target = $region56
        $region55: #{tpu_custom_call.1} parent=35 // pred_region
          %s1082 = ssub.s32 2048, 2048
          %1083 = vsyncadd %s1074, %s1082
          %s1084 = smul.addr %s23, 16
          %s1085 = smul.addr %s1084, 128
          %s1086 = scalar_lea.hbm %s4, %s1085
          %s1087 = sshll.u32 %s1077, 4
          %s1088 = int_to_ptr.vmem [resolvable:$true] %s1087
          %1093 = dma.vmem_to_hbm [thread:$0]  %s1088, 2048, %s1086, %s1074, 128, 128, 8
        $region56: #{tpu_custom_call.1} parent=35 // pred_fallthru
          _
      $region36: #{tpu_custom_call.1} parent=5 // pred_fallthru
        _
      %p1094 = scmp.le.s32.totalorder 2, %s18
      // Predicated region
      $region57: #{tpu_custom_call.1} parent=5 // pred_check
        %p1095 = pneg %p1094
      $region58: #{tpu_custom_call.1} parent=5 // pred_check_branch
        %1097 = sbr.rel (%p1095) target = $region60
      $region59: #{tpu_custom_call.1} parent=5 // pred_region
        %s1098 = ssub.s32 %s18, 2
        // Predicated region
        $region61: #{tpu_custom_call.1} parent=59 // pred_check
          %p1099 = pneg %p136
        $region62: #{tpu_custom_call.1} parent=59 // pred_check_branch
          %1101 = sbr.rel (%p1099) target = $region64
        $region63: #{tpu_custom_call.1} parent=59 // pred_region
          %s1102 = sand.u32 %s121, 1
          %s1103 = scalar_lea.sflag [#allocation4], %s1102
          %s1104 = sand.u32 %s121, 1
          %s1105 = smul.addr %s1104, 128
          %s1106 = scalar_lea.vmem [#allocation10], %s1105
          %1107 = dma.done %s1103, 2048
        $region64: #{tpu_custom_call.1} parent=59 // pred_fallthru
          _
      $region60: #{tpu_custom_call.1} parent=5 // pred_fallthru
        _
    $region6: #{tpu_custom_call.1} parent=1 // loop_footer
      %s22 = sadd.s32 1, %s18
    $region7: #{tpu_custom_call.1} parent=1 // loop_footer_branch
      %17 = sbr.rel target = $region3
    $region8: #{tpu_custom_call.1} parent=1 // loop_exit
      _
    %1108 = vsyncpa [#allocation3], 1
    %s1109 = scalar_lea.sflag [#allocation3], 1
    %1110 = vsyncpa %s1109, 1
    %1111 = vsyncpa [#allocation6], 1
    %1112 = vsyncpa [#allocation9], 1
    %1113 = vsyncpa [#allocation4], 1
    %s1114 = scalar_lea.sflag [#allocation4], 1
    %1115 = vsyncpa %s1114, 1

</llo_original>
